<compile_context>
chip_gen: v5e
topology: v5e:2x2
jax: 0.10.0
libtpu: 0.0.40
codegen_flags: <defaults>
</compile_context>

<pallas_src>
import jax
import jax.numpy as jnp
from jax import lax
from jax.experimental import pallas as pl
from jax.experimental.pallas import tpu as pltpu

# Replication factor fixed by the torch graph: cat x3 then cat x5 along dim 1.
_REPS = 3 * 5


def _make_cat_div_kernel(c: int, out_c: int):
    """Kernel factory so the channel count / output width stay in sync."""

    def kernel(x1_ref, o_ref):
        # x1_ref: SMEM (1, c) scalars;  o_ref: VMEM (1, out_c) = one vreg.
        # Build the replicated tile t[0, j] = x1[0, j % c] via iota + selects
        # (no lane concatenates / shifts).
        lane = lax.broadcasted_iota(jnp.int32, (1, out_c), 1) % c
        t = jnp.zeros((1, out_c), dtype=o_ref.dtype) + x1_ref[0, 0]
        for j in range(1, c):
            t = jnp.where(lane == j, x1_ref[0, j], t)
        # Keep both the subtract and the divide so NaN/inf semantics of
        # (v3 - v4) / v4 survive (do NOT fold t - t -> 0).
        o_ref[...] = (t - t) / t

    return kernel


@jax.jit
def model_forward(x1: jax.Array, x2: jax.Array) -> jax.Array:
    # x2 is dead in the torch model (v2 is never used) -> do not DMA it.
    del x2
    n, c = x1.shape
    out_c = c * _REPS  # cat x3 then cat x5 along axis 1

    return pl.pallas_call(
        _make_cat_div_kernel(c, out_c),
        out_shape=jax.ShapeDtypeStruct((n, out_c), x1.dtype),
        # No grid: single invocation; input lives in SMEM (scalars), output is
        # a single (1, out_c) VMEM tile written with one masked store.
        in_specs=[pl.BlockSpec(memory_space=pltpu.MemorySpace.SMEM)],
        out_specs=pl.BlockSpec(memory_space=pltpu.MemorySpace.VMEM),
    )(x1)


def _reference(x1: jax.Array) -> jax.Array:
    v1 = jnp.concatenate([x1, x1, x1], axis=1)
    v3 = jnp.concatenate([v1, v1, v1, v1, v1], axis=1)
    v4 = jnp.concatenate([v1, v1, v1, v1, v1], axis=1)
    return (v3 - v4) / v4


if __name__ == "__main__":
    key = jax.random.PRNGKey(0)
    k1, k2 = jax.random.split(key)
    x1 = jax.random.normal(k1, (1, 3), dtype=jnp.float32)
    x2 = jax.random.normal(k2, (1, 3), dtype=jnp.float32)

    out = jax.block_until_ready(model_forward(x1, x2))
    ref = _reference(x1)
    assert out.shape == (1, 45), out.shape
    assert out.dtype == jnp.float32, out.dtype
    assert bool(jnp.all(jnp.isclose(out, ref, equal_nan=True))), (out, ref)

    # Corner cases: zero -> 0/0 = NaN, finite nonzero -> 0 (IEEE semantics).
    x1_edge = jnp.array([[0.0, 1.0, -2.0]], dtype=jnp.float32)
    out_edge = jax.block_until_ready(model_forward(x1_edge, x2))
    ref_edge = _reference(x1_edge)
    assert bool(jnp.all(jnp.isclose(out_edge, ref_edge, equal_nan=True))), (
        out_edge,
        ref_edge,
    )

    print("KERNEL_OK")
</pallas_src>

<mosaic_0001>
module attributes {stable_mosaic.version = 11 : i64} {
  func.func @kernel(%arg0: memref<1x3xf32, #tpu.memory_space<smem>>, %arg1: memref<1x45xf32, #tpu.memory_space<vmem>>) attributes {dimension_semantics = [], scalar_prefetch = 0 : i64, scratch_operands = 0 : i64, tpu.core_type = #tpu.core_type<tc>} {
    %0 = tpu.iota {dimensions = array<i32: 1>} : vector<1x45xi32>
    %c3_i32 = arith.constant 3 : i32
    %c0_i32 = arith.constant 0 : i32
    %1 = arith.cmpi eq, %c3_i32, %c0_i32 : i32
    %c1_i32 = arith.constant 1 : i32
    %2 = arith.select %1, %c1_i32, %c3_i32 : i32
    %3 = vector.broadcast %2 : i32 to vector<1x45xi32>
    %4 = arith.remsi %0, %3 : vector<1x45xi32>
    %c0_i32_0 = arith.constant 0 : i32
    %5 = vector.broadcast %c0_i32_0 : i32 to vector<1x45xi32>
    %6 = arith.cmpi ne, %4, %5 : vector<1x45xi32>
    %c0_i32_1 = arith.constant 0 : i32
    %7 = vector.broadcast %c0_i32_1 : i32 to vector<1x45xi32>
    %8 = arith.cmpi slt, %4, %7 : vector<1x45xi32>
    %c0_i32_2 = arith.constant 0 : i32
    %9 = arith.cmpi slt, %2, %c0_i32_2 : i32
    %10 = vector.broadcast %9 : i1 to vector<1x45xi1>
    %11 = vector.broadcast %10 : vector<1x45xi1> to vector<1x45xi1>
    %12 = arith.xori %8, %11 : vector<1x45xi1>
    %13 = arith.andi %12, %6 : vector<1x45xi1>
    %14 = vector.broadcast %2 : i32 to vector<1x45xi32>
    %15 = arith.addi %4, %14 : vector<1x45xi32>
    %16 = arith.select %13, %15, %4 : vector<1x45xi1>, vector<1x45xi32>
    %cst = arith.constant 0.000000e+00 : f32
    %17 = vector.broadcast %cst : f32 to vector<1x45xf32>
    %c0 = arith.constant 0 : index
    %c0_3 = arith.constant 0 : index
    %18 = memref.load %arg0[%c0, %c0_3] : memref<1x3xf32, #tpu.memory_space<smem>>
    %19 = vector.broadcast %18 : f32 to vector<1x45xf32>
    %20 = arith.addf %17, %19 : vector<1x45xf32>
    %c1_i32_4 = arith.constant 1 : i32
    %21 = vector.broadcast %c1_i32_4 : i32 to vector<1x45xi32>
    %22 = arith.cmpi eq, %16, %21 : vector<1x45xi32>
    %c0_5 = arith.constant 0 : index
    %c1 = arith.constant 1 : index
    %23 = memref.load %arg0[%c0_5, %c1] : memref<1x3xf32, #tpu.memory_space<smem>>
    %24 = vector.broadcast %23 : f32 to vector<1x45xf32>
    %25 = arith.select %22, %24, %20 : vector<1x45xi1>, vector<1x45xf32>
    %c2_i32 = arith.constant 2 : i32
    %26 = vector.broadcast %c2_i32 : i32 to vector<1x45xi32>
    %27 = arith.cmpi eq, %16, %26 : vector<1x45xi32>
    %c0_6 = arith.constant 0 : index
    %c2 = arith.constant 2 : index
    %28 = memref.load %arg0[%c0_6, %c2] : memref<1x3xf32, #tpu.memory_space<smem>>
    %29 = vector.broadcast %28 : f32 to vector<1x45xf32>
    %30 = arith.select %27, %29, %25 : vector<1x45xi1>, vector<1x45xf32>
    %31 = arith.subf %30, %30 : vector<1x45xf32>
    %32 = arith.divf %31, %30 : vector<1x45xf32>
    %c0_7 = arith.constant 0 : index
    %c0_8 = arith.constant 0 : index
    %33 = vector.load %arg1[%c0_7, %c0_8] : memref<1x45xf32, #tpu.memory_space<vmem>>, vector<1x45xf32>
    tpu.vector_store %arg1[%c0_7, %c0_8], %32 {strides = array<i32>} : memref<1x45xf32, #tpu.memory_space<vmem>>, vector<1x45xf32>,
    return
  }
}

</mosaic_0001>

<llo_original>
// kernel: model_forward.1
$region0: #{model_forward.1}
  #allocation0 [shape = 'u32[]', space=smem, size = 0x4, offset = 0x4, fixed_abs, tag = 'smem constant byte address 0x4 - core index']
  #allocation1 [shape = 'u32[72,128]{1,0:T(1,128)}', space=vmem, size = 0x9000, scoped, tag = 'internal scratch']
  %s0 = inlined_call_operand.hbm [shape: f32[1,3], index: 0, kind: input, shape index: {}]
  %s1 = inlined_call_operand.hbm [shape: f32[1,45], index: 1, kind: output, shape index: {}]
  %s2 = sld [smem:[#allocation0]]
  $region18: #{model_forward.1} parent=0
    _
  %s4 = ssub.s32 1, %s2
  %s5 = scalar_select 0, %s4, %s2
  $region1: #{model_forward.1} parent=0
    #allocation2 [shape = 'u8[512]{0}', space=smem, size = 0x200, scoped, tag = 'input window, operand 0, single buffered']
    #allocation3 [shape = 's32[1]{0}', space=sflag, size = 0x4, scoped, tag = 'scoped memory for model_forward.1']
    #allocation4 [shape = 's32[1]{0}', space=sflag, size = 0x4, scoped, tag = 'scoped memory for model_forward.1']
    #allocation5 [shape = 'u8[512]{0}', space=vmem, size = 0x400, scoped, tag = 'output window, operand 0, single buffered']
    %6 = vsyncpa [#allocation4], 0
    %7 = vsyncpa [#allocation3], 0
    // Predicated region
    $region2: #{model_forward.1} parent=1 // pred_check
      _
    $region3: #{model_forward.1} parent=1 // pred_check_branch
      %9 = sbr.rel (0) target = $region5
    $region4: #{model_forward.1} parent=1 // pred_region
      %11 = vsyncadd [#allocation4], 0
      %s13 = sshll.u32 %s0, 4
      %s14 = int_to_ptr.hbm [resolvable:$true] %s13
      %16 = dma.hbm_to_smem %s14, 16, [#allocation2], [#allocation4]
    $region5: #{model_forward.1} parent=1 // pred_fallthru
      _
    // Predicated region
    $region6: #{model_forward.1} parent=1 // pred_check
      _
    $region7: #{model_forward.1} parent=1 // pred_check_branch
      %18 = sbr.rel (0) target = $region9
    $region8: #{model_forward.1} parent=1 // pred_region
      %20 = dma.done [#allocation4], 16
    $region9: #{model_forward.1} parent=1 // pred_fallthru
      _
    %21 = sfence
    %v22 = vlaneseq
    %v23 = vand.u32 %v22, 127
    %vm24 = vcmp.lt.s32.totalorder %v23, 0
    %v25 = vsub.s32 0, %v23
    %v26 = vsel %vm24, %v25, %v23
    %v27 = vand.u32 %v26, 65535
    %v28 = vshrl.u32 %v26, 16
    %v30 = vmul.u32 %v27, 43691
    %v31 = vmul.u32 %v27, 43690
    %v32 = vmul.u32 %v28, 43691
    %v33 = vmul.u32 %v28, 43690
    %v34 = vshll.u32 %v31, 16
    %v35 = vshrl.u32 %v31, 16
    %v36 = vshll.u32 %v32, 16
    %v37 = vshrl.u32 %v32, 16
    %vm38 = vc.u32 %v30, %v34
    %v39 = vsel %vm38, 1, 0
    %v40 = vadd.s32 %v30, %v34
    %v41 = vadd.s32 %v33, %v39
    %vm42 = vc.u32 %v40, %v36
    %v43 = vsel %vm42, 1, 0
    %v44 = vadd.s32 %v40, %v36
    %v45 = vadd.s32 %v41, %v43
    %v46 = vadd.s32 %v45, %v35
    %v47 = vadd.s32 %v46, %v37
    %v48 = vshrl.u32 %v47, 1
    %v49 = vmul.u32 %v48, 3
    %v50 = vsub.s32 %v26, %v49
    %v51 = vsub.s32 0, %v50
    %v52 = vsel %vm24, %v51, %v50
    %vm53 = vcmp.ne.s32.totalorder %v52, 0
    %vm54 = vcmp.lt.s32.totalorder %v52, 0
    %vm55 = vmand %vm54, %vm53
    %v56 = vadd.s32 %v52, 3
    %v57 = vsel %vm55, %v56, %v52
    %s58 = sld [smem:[#allocation2]]
    %v59 = vstv %s58
    %v60 = vadd.f32 %v59, 0.0
    %vm61 = vcmp.eq.s32.totalorder %v57, 1
    %s62 = sld [smem:[#allocation2 + $0x1]]
    %v63 = vstv %s62
    %v64 = vsel %vm61, %v63, %v60
    %vm65 = vcmp.eq.s32.totalorder %v57, 2
    %s66 = sld [smem:[#allocation2 + $0x2]]
    %v67 = vstv %s66
    %v68 = vsel %vm65, %v67, %v64
    %v69 = vsub.f32 %v68, %v68
    %v70 = vrcp.pop %v68
    %v71 = vmul.f32 %v68, %v70
    %v72 = vsub.f32 1.0, %v71
    %v73 = vmul.f32 %v70, %v72
    %v74 = vadd.f32 %v70, %v73
    %vm75 = vweird.f32 %v68
    %vm76 = vweird.f32 %v70
    %vm77 = vmor %vm75, %vm76
    %v78 = vsel %vm77, %v70, %v74
    %v79 = vand.u32 2147483647, %v68
    %vm80 = vcmp.eq.f32.partialorder %v79, 8.507059e+37
    %v81 = vand.u32 %v68, 2147483648
    %v82 = vor.u32 1.1754944e-38, %v81
    %v83 = vsel %vm80, %v82, %v78
    %v84 = vmul.f32 %v69, %v83
    %vm85 = vcmask 360448
    %86 = vst.msk [vmem:[#allocation5] sm:$0x1] %vm85, %v84
    // Predicated region
    $region10: #{model_forward.1} parent=1 // pred_check
      _
    $region11: #{model_forward.1} parent=1 // pred_check_branch
      %88 = sbr.rel (0) target = $region13
    $region12: #{model_forward.1} parent=1 // pred_region
      %90 = vsyncadd [#allocation3], 0
      %s92 = sshll.u32 [#allocation5], 4
      %s93 = int_to_ptr.vmem [resolvable:$true] %s92
      %s94 = sshll.u32 %s1, 4
      %s95 = int_to_ptr.hbm [resolvable:$true] %s94
      %97 = dma.vmem_to_hbm [thread:$0]  %s93, 16, %s95, [#allocation3]
    $region13: #{model_forward.1} parent=1 // pred_fallthru
      _
    // Predicated region
    $region14: #{model_forward.1} parent=1 // pred_check
      _
    $region15: #{model_forward.1} parent=1 // pred_check_branch
      %99 = sbr.rel (0) target = $region17
    $region16: #{model_forward.1} parent=1 // pred_region
      %101 = dma.done [#allocation3], 16
    $region17: #{model_forward.1} parent=1 // pred_fallthru
      _
    %102 = vsyncpa [#allocation3], 1
    %103 = vsyncpa [#allocation4], 1

</llo_original>
